<compile_context>
chip_gen: v7x
topology: tpu7x:2x2x1
jax: 0.10.0
libtpu: 0.0.40
codegen_flags: <defaults>
</compile_context>

<pallas_src>
import jax
import jax.numpy as jnp
from jax.experimental import pallas as pl
from jax.experimental.pallas import tpu as pltpu


def _round_up(x, m):
    return (x + m - 1) // m * m


def _actor_kernel(scale_ref, x_ref, w1_ref, b1_ref, w2_ref, b2_ref,
                  w3_ref, b3_ref, o_ref):
    # One batch tile per grid step; weights/biases are VMEM-resident.
    x = x_ref[...].astype(jnp.bfloat16)                              # (TB, S)
    h1 = jnp.dot(x, w1_ref[...], preferred_element_type=jnp.float32)
    h1 = jnp.maximum(h1 + b1_ref[...], 0.0)                          # f32 (TB, 256)
    h2 = jnp.dot(h1.astype(jnp.bfloat16), w2_ref[...],
                 preferred_element_type=jnp.float32)
    h2 = jnp.maximum(h2 + b2_ref[...], 0.0)                          # f32 (TB, 256)
    y = jnp.dot(h2.astype(jnp.bfloat16), w3_ref[...],
                preferred_element_type=jnp.float32)
    y = jnp.tanh(y + b3_ref[...])                                    # f32 (TB, A)
    o_ref[...] = (scale_ref[0, 0] * y).astype(o_ref.dtype)


def prepare_actor_params(params):
    """One-time conversion: weights -> bf16 (MXU operands), biases -> f32 (1, N)."""
    w1, b1, w2, b2, w3, b3 = params
    return (w1.astype(jnp.bfloat16), b1.astype(jnp.float32).reshape(1, -1),
            w2.astype(jnp.bfloat16), b2.astype(jnp.float32).reshape(1, -1),
            w3.astype(jnp.bfloat16), b3.astype(jnp.float32).reshape(1, -1))


def _batch_semantics(num_steps):
    # Only core-parallel semantics actually shard grid steps across v7x's two
    # TensorCores; on single-TC parts keep plain "parallel" (safe everywhere).
    try:
        kind = jax.devices()[0].device_kind.lower()
    except Exception:  # pragma: no cover - defensive
        kind = ""
    if num_steps >= 2 and ("v7" in kind or "7x" in kind):
        return (pltpu.CORE_PARALLEL,)
    return ("parallel",)


def actor_forward(x, prepared_params, max_action, *, tile_b=1024):
    """x: (batch, state_dim) f32/bf16. prepared_params: from prepare_actor_params."""
    w1, b1, w2, b2, w3, b3 = prepared_params
    batch, state_dim = x.shape
    hidden = w1.shape[1]
    action_dim = w3.shape[1]

    # Batch tiling: multiple of 16 (bf16 sublane packing). If the whole batch
    # fits in one tile, use exactly the batch extent (valid block shape, no
    # padding at all); otherwise Pallas pads only the ragged last block.
    tile_b = max(16, _round_up(tile_b, 16))
    tb = batch if batch <= tile_b else tile_b
    num_steps = pl.cdiv(batch, tb)

    scale = jnp.asarray(max_action, jnp.float32).reshape(1, 1)
    const = lambda i: (0, 0)   # weights/biases: same block every step -> resident

    out = pl.pallas_call(
        _actor_kernel,
        out_shape=jax.ShapeDtypeStruct((batch, action_dim), jnp.float32),
        grid=(num_steps,),
        in_specs=[
            # max_action as an SMEM scalar (whole array, untiled).
            pl.BlockSpec(memory_space=pltpu.MemorySpace.SMEM),
            pl.BlockSpec((tb, state_dim), lambda i: (i, 0)),         # x (streamed)
            pl.BlockSpec((state_dim, hidden), const),                # W1
            pl.BlockSpec((1, hidden), const),                        # b1
            pl.BlockSpec((hidden, hidden), const),                   # W2
            pl.BlockSpec((1, hidden), const),                        # b2
            pl.BlockSpec((hidden, action_dim), const),               # W3
            pl.BlockSpec((1, action_dim), const),                    # b3
        ],
        out_specs=pl.BlockSpec((tb, action_dim), lambda i: (i, 0)),
        compiler_params=pltpu.CompilerParams(
            dimension_semantics=_batch_semantics(num_steps),
        ),
    )(scale, x, w1, b1, w2, b2, w3, b3)

    return out


def init_actor_params(key, state_dim, action_dim, hidden=256):
    # Deterministic synthetic init (PyTorch-style uniform fan-in bounds), f32.
    ks = jax.random.split(key, 6)

    def lin(kw, kb, fan_in, fan_out):
        bound = 1.0 / jnp.sqrt(fan_in)
        w = jax.random.uniform(kw, (fan_in, fan_out), jnp.float32, -bound, bound)
        b = jax.random.uniform(kb, (1, fan_out), jnp.float32, -bound, bound)
        return w, b

    w1, b1 = lin(ks[0], ks[1], state_dim, hidden)
    w2, b2 = lin(ks[2], ks[3], hidden, hidden)
    w3, b3 = lin(ks[4], ks[5], hidden, action_dim)
    return (w1, b1, w2, b2, w3, b3)


def actor_reference(x, params, max_action):
    # Matches the kernel's numerics: bf16 matmul operands, f32 accumulation.
    w1, b1, w2, b2, w3, b3 = params
    f32 = jnp.float32
    bf = lambda a: a.astype(jnp.bfloat16).astype(f32)
    hi = jax.lax.Precision.HIGHEST
    h1 = jax.nn.relu(jnp.dot(bf(x), bf(w1), precision=hi) + b1)
    h2 = jax.nn.relu(jnp.dot(bf(h1), bf(w2), precision=hi) + b2)
    return max_action * jnp.tanh(jnp.dot(bf(h2), bf(w3), precision=hi) + b3)


if __name__ == "__main__":
    key = jax.random.PRNGKey(0)
    k_x, k_p = jax.random.split(key)

    batch, state_dim, action_dim = 2, 16, 8
    max_action = 1.0

    x = jax.random.normal(k_x, (batch, state_dim), jnp.float32)
    params = init_actor_params(k_p, state_dim, action_dim)
    prepared = prepare_actor_params(params)   # one-time weight conversion

    out = actor_forward(x, prepared, max_action)
    out = jax.block_until_ready(out)

    ref = actor_reference(x, params, max_action)
    assert out.shape == (batch, action_dim)
    assert jnp.allclose(out, ref, atol=2e-4, rtol=2e-4), "mismatch vs reference"

    print("KERNEL_OK")
</pallas_src>

<mosaic_0001>
module attributes {stable_mosaic.version = 11 : i64} {
  func.func @_actor_kernel(%arg0: i32, %arg1: memref<1x1xf32, #tpu.memory_space<smem>>, %arg2: memref<2x16xf32, #tpu.memory_space<vmem>>, %arg3: memref<16x256xbf16, #tpu.memory_space<vmem>>, %arg4: memref<1x256xf32, #tpu.memory_space<vmem>>, %arg5: memref<256x256xbf16, #tpu.memory_space<vmem>>, %arg6: memref<1x256xf32, #tpu.memory_space<vmem>>, %arg7: memref<256x8xbf16, #tpu.memory_space<vmem>>, %arg8: memref<1x8xf32, #tpu.memory_space<vmem>>, %arg9: memref<2x8xf32, #tpu.memory_space<vmem>>) attributes {dimension_semantics = [#tpu.dimension_semantics<parallel>], iteration_bounds = array<i64: 1>, scalar_prefetch = 0 : i64, scratch_operands = 0 : i64, tpu.core_type = #tpu.core_type<tc>, window_params = [{transform_indices = @transform_0, window_bounds = array<i64: 1, 1>}, {transform_indices = @transform_1, window_bounds = array<i64: 2, 16>}, {pipeline_mode = #tpu.pipeline_mode<synchronous>, transform_indices = @transform_2, window_bounds = array<i64: 16, 256>}, {pipeline_mode = #tpu.pipeline_mode<synchronous>, transform_indices = @transform_3, window_bounds = array<i64: 1, 256>}, {pipeline_mode = #tpu.pipeline_mode<synchronous>, transform_indices = @transform_4, window_bounds = array<i64: 256, 256>}, {pipeline_mode = #tpu.pipeline_mode<synchronous>, transform_indices = @transform_5, window_bounds = array<i64: 1, 256>}, {pipeline_mode = #tpu.pipeline_mode<synchronous>, transform_indices = @transform_6, window_bounds = array<i64: 256, 8>}, {pipeline_mode = #tpu.pipeline_mode<synchronous>, transform_indices = @transform_7, window_bounds = array<i64: 1, 8>}, {transform_indices = @transform_8, window_bounds = array<i64: 2, 8>}]} {
    %c0 = arith.constant 0 : index
    %c0_0 = arith.constant 0 : index
    %0 = vector.load %arg2[%c0, %c0_0] : memref<2x16xf32, #tpu.memory_space<vmem>>, vector<2x16xf32>
    %1 = arith.truncf %0 : vector<2x16xf32> to vector<2x16xbf16>
    %c0_1 = arith.constant 0 : index
    %c0_2 = arith.constant 0 : index
    %2 = vector.load %arg3[%c0_1, %c0_2] : memref<16x256xbf16, #tpu.memory_space<vmem>>, vector<16x256xbf16>
    %cst = arith.constant dense<0.000000e+00> : vector<2x256xf32>
    %3 = tpu.matmul %1, %2, %cst {dimension_numbers = #tpu.dot_dimension_numbers<[1], [0], [0], [1], [0, 0, 1, 1], [], []>} : vector<2x16xbf16>, vector<16x256xbf16>, vector<2x256xf32> -> vector<2x256xf32>
    %c0_3 = arith.constant 0 : index
    %c0_4 = arith.constant 0 : index
    %4 = vector.load %arg4[%c0_3, %c0_4] : memref<1x256xf32, #tpu.memory_space<vmem>>, vector<1x256xf32>
    %5 = vector.broadcast %4 : vector<1x256xf32> to vector<2x256xf32>
    %6 = arith.addf %3, %5 : vector<2x256xf32>
    %cst_5 = arith.constant 0.000000e+00 : f32
    %7 = vector.broadcast %cst_5 : f32 to vector<2x256xf32>
    %8 = arith.maximumf %6, %7 : vector<2x256xf32>
    %9 = arith.truncf %8 : vector<2x256xf32> to vector<2x256xbf16>
    %c0_6 = arith.constant 0 : index
    %c0_7 = arith.constant 0 : index
    %10 = vector.load %arg5[%c0_6, %c0_7] : memref<256x256xbf16, #tpu.memory_space<vmem>>, vector<256x256xbf16>
    %cst_8 = arith.constant dense<0.000000e+00> : vector<2x256xf32>
    %11 = tpu.matmul %9, %10, %cst_8 {dimension_numbers = #tpu.dot_dimension_numbers<[1], [0], [0], [1], [0, 0, 1, 1], [], []>} : vector<2x256xbf16>, vector<256x256xbf16>, vector<2x256xf32> -> vector<2x256xf32>
    %c0_9 = arith.constant 0 : index
    %c0_10 = arith.constant 0 : index
    %12 = vector.load %arg6[%c0_9, %c0_10] : memref<1x256xf32, #tpu.memory_space<vmem>>, vector<1x256xf32>
    %13 = vector.broadcast %12 : vector<1x256xf32> to vector<2x256xf32>
    %14 = arith.addf %11, %13 : vector<2x256xf32>
    %cst_11 = arith.constant 0.000000e+00 : f32
    %15 = vector.broadcast %cst_11 : f32 to vector<2x256xf32>
    %16 = arith.maximumf %14, %15 : vector<2x256xf32>
    %17 = arith.truncf %16 : vector<2x256xf32> to vector<2x256xbf16>
    %c0_12 = arith.constant 0 : index
    %c0_13 = arith.constant 0 : index
    %18 = vector.load %arg7[%c0_12, %c0_13] : memref<256x8xbf16, #tpu.memory_space<vmem>>, vector<256x8xbf16>
    %cst_14 = arith.constant dense<0.000000e+00> : vector<2x8xf32>
    %19 = tpu.matmul %17, %18, %cst_14 {dimension_numbers = #tpu.dot_dimension_numbers<[1], [0], [0], [1], [0, 0, 1, 1], [], []>} : vector<2x256xbf16>, vector<256x8xbf16>, vector<2x8xf32> -> vector<2x8xf32>
    %c0_15 = arith.constant 0 : index
    %c0_16 = arith.constant 0 : index
    %20 = vector.load %arg8[%c0_15, %c0_16] : memref<1x8xf32, #tpu.memory_space<vmem>>, vector<1x8xf32>
    %21 = vector.broadcast %20 : vector<1x8xf32> to vector<2x8xf32>
    %22 = arith.addf %19, %21 : vector<2x8xf32>
    %23 = math.tanh %22 : vector<2x8xf32>
    %c0_17 = arith.constant 0 : index
    %c0_18 = arith.constant 0 : index
    %24 = memref.load %arg1[%c0_17, %c0_18] : memref<1x1xf32, #tpu.memory_space<smem>>
    %25 = vector.broadcast %24 : f32 to vector<2x8xf32>
    %26 = arith.mulf %25, %23 : vector<2x8xf32>
    %c0_19 = arith.constant 0 : index
    %c0_20 = arith.constant 0 : index
    %27 = vector.load %arg9[%c0_19, %c0_20] : memref<2x8xf32, #tpu.memory_space<vmem>>, vector<2x8xf32>
    tpu.vector_store %arg9[%c0_19, %c0_20], %26 {strides = array<i32>} : memref<2x8xf32, #tpu.memory_space<vmem>>, vector<2x8xf32>,
    return
  }
  func.func @transform_0(%arg0: i32) -> (i32, i32) {
    %c0_i32 = arith.constant 0 : i32
    %c0_i32_0 = arith.constant 0 : i32
    %c0_i32_1 = arith.constant 0 : i32
    return %c0_i32, %c0_i32_0 : i32, i32
  }
  func.func @transform_1(%arg0: i32) -> (i32, i32) {
    %c0_i32 = arith.constant 0 : i32
    %c0_i32_0 = arith.constant 0 : i32
    return %arg0, %c0_i32 : i32, i32
  }
  func.func @transform_2(%arg0: i32) -> (i32, i32) {
    %c0_i32 = arith.constant 0 : i32
    %c0_i32_0 = arith.constant 0 : i32
    %c0_i32_1 = arith.constant 0 : i32
    return %c0_i32, %c0_i32_0 : i32, i32
  }
  func.func @transform_3(%arg0: i32) -> (i32, i32) {
    %c0_i32 = arith.constant 0 : i32
    %c0_i32_0 = arith.constant 0 : i32
    %c0_i32_1 = arith.constant 0 : i32
    return %c0_i32, %c0_i32_0 : i32, i32
  }
  func.func @transform_4(%arg0: i32) -> (i32, i32) {
    %c0_i32 = arith.constant 0 : i32
    %c0_i32_0 = arith.constant 0 : i32
    %c0_i32_1 = arith.constant 0 : i32
    return %c0_i32, %c0_i32_0 : i32, i32
  }
  func.func @transform_5(%arg0: i32) -> (i32, i32) {
    %c0_i32 = arith.constant 0 : i32
    %c0_i32_0 = arith.constant 0 : i32
    %c0_i32_1 = arith.constant 0 : i32
    return %c0_i32, %c0_i32_0 : i32, i32
  }
  func.func @transform_6(%arg0: i32) -> (i32, i32) {
    %c0_i32 = arith.constant 0 : i32
    %c0_i32_0 = arith.constant 0 : i32
    %c0_i32_1 = arith.constant 0 : i32
    return %c0_i32, %c0_i32_0 : i32, i32
  }
  func.func @transform_7(%arg0: i32) -> (i32, i32) {
    %c0_i32 = arith.constant 0 : i32
    %c0_i32_0 = arith.constant 0 : i32
    %c0_i32_1 = arith.constant 0 : i32
    return %c0_i32, %c0_i32_0 : i32, i32
  }
  func.func @transform_8(%arg0: i32) -> (i32, i32) {
    %c0_i32 = arith.constant 0 : i32
    %c0_i32_0 = arith.constant 0 : i32
    return %arg0, %c0_i32 : i32, i32
  }
}

</mosaic_0001>

<llo_original>
// kernel: tpu_custom_call.1
$region0: #{tpu_custom_call.1}
  #allocation0 [shape = 'u32[]', space=smem, size = 0x4, offset = 0x4, fixed_abs, tag = 'smem constant byte address 0x4 - core index']
  #allocation1 [shape = 'u32[144,128]{1,0:T(1,128)}', space=vmem, size = 0x12000, scoped, tag = 'internal scratch']
  #allocation2 [shape = 'f32[1,1]{1,0:T(1,128)S(6)}', space=smem, size = 0x200, scoped, tag = 'scoped memory for tpu_custom_call.1']
  %s0 = inlined_call_operand.<no memory space> [shape: f32[1,1], index: 0, kind: input, shape index: {}]
  %s1 = inlined_call_operand.vmem [shape: f32[2,16], index: 1, kind: input, shape index: {}]
  %s2 = inlined_call_operand.vmem [shape: bf16[16,256], index: 2, kind: input, shape index: {}]
  %s3 = inlined_call_operand.vmem [shape: f32[1,256], index: 3, kind: input, shape index: {}]
  %s4 = inlined_call_operand.hbm [shape: bf16[256,256], index: 4, kind: input, shape index: {}]
  %s5 = inlined_call_operand.vmem [shape: f32[1,256], index: 5, kind: input, shape index: {}]
  %s6 = inlined_call_operand.vmem [shape: bf16[256,8], index: 6, kind: input, shape index: {}]
  %s7 = inlined_call_operand.vmem [shape: f32[1,8], index: 7, kind: input, shape index: {}]
  %s8 = inlined_call_operand.hbm [shape: f32[2,8], index: 8, kind: output, shape index: {}]
  %s9 = sld [smem:[#allocation0]]
  $region46: #{tpu_custom_call.1} parent=0
    _
  %s11 = ssub.s32 1, %s9
  %s12 = scalar_select 0, %s11, %s9
  %13 = sst [smem:[#allocation2]] %s0
  $region1: #{tpu_custom_call.1} parent=0
    #allocation3 [shape = 'u8[131072]{0}', space=vmem, size = 0x20000, scoped, tag = 'input window, operand 4, single buffered']
    #allocation4 [shape = 's32[1]{0}', space=sflag, size = 0x4, scoped, tag = 'scoped memory for tpu_custom_call.1']
    #allocation5 [shape = 's32[1]{0}', space=sflag, size = 0x4, scoped, tag = 'scoped memory for tpu_custom_call.1']
    #allocation6 [shape = 'u8[1024]{0}', space=vmem, size = 0x400, scoped, tag = 'output window, operand 0, single buffered']
    %14 = vsyncpa [#allocation4], 0
    %15 = vsyncpa [#allocation5], 0
    // Predicated region
    $region2: #{tpu_custom_call.1} parent=1 // pred_check
      _
    $region3: #{tpu_custom_call.1} parent=1 // pred_check_branch
      %17 = sbr.rel (0) target = $region5
    $region4: #{tpu_custom_call.1} parent=1 // pred_region
      _
    $region5: #{tpu_custom_call.1} parent=1 // pred_fallthru
      _
    // Predicated region
    $region6: #{tpu_custom_call.1} parent=1 // pred_check
      _
    $region7: #{tpu_custom_call.1} parent=1 // pred_check_branch
      %19 = sbr.rel (0) target = $region9
    $region8: #{tpu_custom_call.1} parent=1 // pred_region
      _
    $region9: #{tpu_custom_call.1} parent=1 // pred_fallthru
      _
    // Predicated region
    $region10: #{tpu_custom_call.1} parent=1 // pred_check
      _
    $region11: #{tpu_custom_call.1} parent=1 // pred_check_branch
      %21 = sbr.rel (0) target = $region13
    $region12: #{tpu_custom_call.1} parent=1 // pred_region
      _
    $region13: #{tpu_custom_call.1} parent=1 // pred_fallthru
      _
    // Predicated region
    $region14: #{tpu_custom_call.1} parent=1 // pred_check
      _
    $region15: #{tpu_custom_call.1} parent=1 // pred_check_branch
      %23 = sbr.rel (0) target = $region17
    $region16: #{tpu_custom_call.1} parent=1 // pred_region
      _
    $region17: #{tpu_custom_call.1} parent=1 // pred_fallthru
      _
    // Predicated region
    $region18: #{tpu_custom_call.1} parent=1 // pred_check
      _
    $region19: #{tpu_custom_call.1} parent=1 // pred_check_branch
      %25 = sbr.rel (0) target = $region21
    $region20: #{tpu_custom_call.1} parent=1 // pred_region
      %s27 = ssub.s32 4096, 4096
      %28 = vsyncadd [#allocation4], %s27
      %s29 = sshll.u32 [#allocation3], 4
      %s30 = int_to_ptr.vmem [resolvable:$true] %s29
      %35 = dma.hbm_to_vmem [thread:$0]  %s4, 4096, %s30, [#allocation4], 128, 128, 8
    $region21: #{tpu_custom_call.1} parent=1 // pred_fallthru
      _
    // Predicated region
    $region22: #{tpu_custom_call.1} parent=1 // pred_check
      _
    $region23: #{tpu_custom_call.1} parent=1 // pred_check_branch
      %37 = sbr.rel (0) target = $region25
    $region24: #{tpu_custom_call.1} parent=1 // pred_region
      _
    $region25: #{tpu_custom_call.1} parent=1 // pred_fallthru
      _
    // Predicated region
    $region26: #{tpu_custom_call.1} parent=1 // pred_check
      _
    $region27: #{tpu_custom_call.1} parent=1 // pred_check_branch
      %39 = sbr.rel (0) target = $region29
    $region28: #{tpu_custom_call.1} parent=1 // pred_region
      _
    $region29: #{tpu_custom_call.1} parent=1 // pred_fallthru
      _
    // Predicated region
    $region30: #{tpu_custom_call.1} parent=1 // pred_check
      _
    $region31: #{tpu_custom_call.1} parent=1 // pred_check_branch
      %41 = sbr.rel (0) target = $region33
    $region32: #{tpu_custom_call.1} parent=1 // pred_region
      _
    $region33: #{tpu_custom_call.1} parent=1 // pred_fallthru
      _
    // Predicated region
    $region34: #{tpu_custom_call.1} parent=1 // pred_check
      _
    $region35: #{tpu_custom_call.1} parent=1 // pred_check_branch
      %43 = sbr.rel (0) target = $region37
    $region36: #{tpu_custom_call.1} parent=1 // pred_region
      %44 = dma.done [#allocation4], 4096
    $region37: #{tpu_custom_call.1} parent=1 // pred_fallthru
      _
    %v46 = vld [vmem:[%s1] sm:$0x3]
    %v47 = vpack.c.bf16 %v46, %v46
    %v48 = vld [vmem:[%s2] sm:$0xff]
    %v49 = vld [vmem:[%s2 + $0x8] sm:$0xff]
    %v50 = vld [vmem:[%s3] sm:$0x3]
    %v52 = vlaneseq
    %v53 = vshrl.u32 %v52, 7
    %v54 = vsub.s32 0, %v53
    %v55 = vrot.slane %v50, %v54
    %v56 = vlaneseq
    %v57 = vshrl.u32 %v56, 7
    %v58 = vsub.s32 1, %v57
    %v59 = vrot.slane %v50, %v58
    %v64 = vunpack.c.l.b16 %v48
    %v65 = vunpack.c.h.b16 %v48
    %v66 = vunpack.c.l.b16 %v49
    %v67 = vunpack.c.h.b16 %v49
    %v68 = vpack.c.b16 %v66, %v64
    %v69 = vpack.c.b16 %v67, %v65
    %vm72 = vcmask 130048
    %v74 = vsel %vm72, %v47, 0
    %76 = vmatprep.subr.bf16.mxu0 %v69
    %77 = vmatpush1.bf16.msra.mxu0 %v68
    %78 = vmatprep.subr.bf16.mxu0 0
    %79 = vmatpush1.bf16.msra.mxu0 0
    %80 = vmatprep.subr.bf16.mxu0 0
    %81 = vmatpush1.bf16.msra.mxu0 0
    %82 = vmatprep.subr.bf16.mxu0 0
    %83 = vmatpush1.bf16.msra.mxu0 0
    %84 = vmatprep.subr.bf16.mxu0 0
    %85 = vmatpush1.bf16.msra.mxu0 0
    %86 = vmatprep.subr.bf16.mxu0 0
    %87 = vmatpush1.bf16.msra.mxu0 0
    %88 = vmatprep.subr.bf16.mxu0 0
    %89 = vmatpush1.bf16.msra.mxu0 0
    %90 = vmatprep.subr.bf16.mxu0 0
    %91 = vmatpush1.bf16.msra.mxu0 0
    %92 = vmatprep.subr.bf16.mxu0 0
    %93 = vmatpush1.bf16.msra.mxu0 0
    %94 = vmatprep.subr.bf16.mxu0 0
    %95 = vmatpush1.bf16.msra.mxu0 0
    %96 = vmatprep.subr.bf16.mxu0 0
    %97 = vmatpush1.bf16.msra.mxu0 0
    %98 = vmatprep.subr.bf16.mxu0 0
    %99 = vmatpush1.bf16.msra.mxu0 0
    %100 = vmatprep.subr.bf16.mxu0 0
    %101 = vmatpush1.bf16.msra.mxu0 0
    %102 = vmatprep.subr.bf16.mxu0 0
    %103 = vmatpush1.bf16.msra.mxu0 0
    %104 = vmatprep.subr.bf16.mxu0 0
    %105 = vmatpush1.bf16.msra.mxu0 0
    %106 = vmatprep.subr.bf16.mxu0 0
    %107 = vmatpush1.bf16.msra.mxu0 0
    %108 = vmatprep.mubr.bf16.mxu0 0
    %109 = vmatmul.mubr.bf16.gmra.mrb[0].mxu0 %v74
    %v110 = vpop.f32.mrb[0].mxu0
    %v111 = vadd.f32 %v55, %v110
    %v112 = vpop.f32.mrb[0].mxu0
    %v113 = vadd.f32 %v59, %v112
    %v114 = vpop.f32.mrb[0].mxu0
    %v115 = vpop.f32.mrb[0].mxu0
    %116 = vdwg.mxu0
    %v117 = vmax.f32 %v111, 0.0
    %v118 = vmax.f32 %v113, 0.0
    %v119 = vpack.c.bf16 %v117, %v117
    %v120 = vpack.c.bf16 %v118, %v118
    %v121 = vld [vmem:[#allocation3] sm:$0xff]
    %v122 = vld [vmem:[#allocation3 + $0x8] sm:$0xff]
    %v123 = vld [vmem:[#allocation3 + $0x10] sm:$0xff]
    %v124 = vld [vmem:[#allocation3 + $0x18] sm:$0xff]
    %v125 = vld [vmem:[#allocation3 + $0x20] sm:$0xff]
    %v126 = vld [vmem:[#allocation3 + $0x28] sm:$0xff]
    %v127 = vld [vmem:[#allocation3 + $0x30] sm:$0xff]
    %v128 = vld [vmem:[#allocation3 + $0x38] sm:$0xff]
    %v129 = vld [vmem:[#allocation3 + $0x40] sm:$0xff]
    %v130 = vld [vmem:[#allocation3 + $0x48] sm:$0xff]
    %v131 = vld [vmem:[#allocation3 + $0x50] sm:$0xff]
    %v132 = vld [vmem:[#allocation3 + $0x58] sm:$0xff]
    %v133 = vld [vmem:[#allocation3 + $0x60] sm:$0xff]
    %v134 = vld [vmem:[#allocation3 + $0x68] sm:$0xff]
    %v135 = vld [vmem:[#allocation3 + $0x70] sm:$0xff]
    %v136 = vld [vmem:[#allocation3 + $0x78] sm:$0xff]
    %v137 = vld [vmem:[#allocation3 + $0x80] sm:$0xff]
    %v138 = vld [vmem:[#allocation3 + $0x88] sm:$0xff]
    %v139 = vld [vmem:[#allocation3 + $0x90] sm:$0xff]
    %v140 = vld [vmem:[#allocation3 + $0x98] sm:$0xff]
    %v141 = vld [vmem:[#allocation3 + $0xa0] sm:$0xff]
    %v142 = vld [vmem:[#allocation3 + $0xa8] sm:$0xff]
    %v143 = vld [vmem:[#allocation3 + $0xb0] sm:$0xff]
    %v144 = vld [vmem:[#allocation3 + $0xb8] sm:$0xff]
    %v145 = vld [vmem:[#allocation3 + $0xc0] sm:$0xff]
    %v146 = vld [vmem:[#allocation3 + $0xc8] sm:$0xff]
    %v147 = vld [vmem:[#allocation3 + $0xd0] sm:$0xff]
    %v148 = vld [vmem:[#allocation3 + $0xd8] sm:$0xff]
    %v149 = vld [vmem:[#allocation3 + $0xe0] sm:$0xff]
    %v150 = vld [vmem:[#allocation3 + $0xe8] sm:$0xff]
    %v151 = vld [vmem:[#allocation3 + $0xf0] sm:$0xff]
    %v152 = vld [vmem:[#allocation3 + $0xf8] sm:$0xff]
    %v153 = vld [vmem:[%s5] sm:$0x3]
    %v155 = vlaneseq
    %v156 = vshrl.u32 %v155, 7
    %v157 = vsub.s32 0, %v156
    %v158 = vrot.slane %v153, %v157
    %v159 = vlaneseq
    %v160 = vshrl.u32 %v159, 7
    %v161 = vsub.s32 1, %v160
    %v162 = vrot.slane %v153, %v161
    %v197 = vunpack.c.l.b16 %v121
    %v198 = vunpack.c.h.b16 %v121
    %v199 = vunpack.c.l.b16 %v122
    %v200 = vunpack.c.h.b16 %v122
    %v201 = vunpack.c.l.b16 %v123
    %v202 = vunpack.c.h.b16 %v123
    %v203 = vunpack.c.l.b16 %v124
    %v204 = vunpack.c.h.b16 %v124
    %v205 = vunpack.c.l.b16 %v125
    %v206 = vunpack.c.h.b16 %v125
    %v207 = vunpack.c.l.b16 %v126
    %v208 = vunpack.c.h.b16 %v126
    %v209 = vunpack.c.l.b16 %v127
    %v210 = vunpack.c.h.b16 %v127
    %v211 = vunpack.c.l.b16 %v128
    %v212 = vunpack.c.h.b16 %v128
    %v213 = vunpack.c.l.b16 %v129
    %v214 = vunpack.c.h.b16 %v129
    %v215 = vunpack.c.l.b16 %v130
    %v216 = vunpack.c.h.b16 %v130
    %v217 = vunpack.c.l.b16 %v131
    %v218 = vunpack.c.h.b16 %v131
    %v219 = vunpack.c.l.b16 %v132
    %v220 = vunpack.c.h.b16 %v132
    %v221 = vunpack.c.l.b16 %v133
    %v222 = vunpack.c.h.b16 %v133
    %v223 = vunpack.c.l.b16 %v134
    %v224 = vunpack.c.h.b16 %v134
    %v225 = vunpack.c.l.b16 %v135
    %v226 = vunpack.c.h.b16 %v135
    %v227 = vunpack.c.l.b16 %v136
    %v228 = vunpack.c.h.b16 %v136
    %v229 = vunpack.c.l.b16 %v137
    %v230 = vunpack.c.h.b16 %v137
    %v231 = vunpack.c.l.b16 %v138
    %v232 = vunpack.c.h.b16 %v138
    %v233 = vunpack.c.l.b16 %v139
    %v234 = vunpack.c.h.b16 %v139
    %v235 = vunpack.c.l.b16 %v140
    %v236 = vunpack.c.h.b16 %v140
    %v237 = vunpack.c.l.b16 %v141
    %v238 = vunpack.c.h.b16 %v141
    %v239 = vunpack.c.l.b16 %v142
    %v240 = vunpack.c.h.b16 %v142
    %v241 = vunpack.c.l.b16 %v143
    %v242 = vunpack.c.h.b16 %v143
    %v243 = vunpack.c.l.b16 %v144
    %v244 = vunpack.c.h.b16 %v144
    %v245 = vunpack.c.l.b16 %v145
    %v246 = vunpack.c.h.b16 %v145
    %v247 = vunpack.c.l.b16 %v146
    %v248 = vunpack.c.h.b16 %v146
    %v249 = vunpack.c.l.b16 %v147
    %v250 = vunpack.c.h.b16 %v147
    %v251 = vunpack.c.l.b16 %v148
    %v252 = vunpack.c.h.b16 %v148
    %v253 = vunpack.c.l.b16 %v149
    %v254 = vunpack.c.h.b16 %v149
    %v255 = vunpack.c.l.b16 %v150
    %v256 = vunpack.c.h.b16 %v150
    %v257 = vunpack.c.l.b16 %v151
    %v258 = vunpack.c.h.b16 %v151
    %v259 = vunpack.c.l.b16 %v152
    %v260 = vunpack.c.h.b16 %v152
    %v261 = vpack.c.b16 %v199, %v197
    %v262 = vpack.c.b16 %v200, %v198
    %v263 = vpack.c.b16 %v203, %v201
    %v264 = vpack.c.b16 %v204, %v202
    %v265 = vpack.c.b16 %v207, %v205
    %v266 = vpack.c.b16 %v208, %v206
    %v267 = vpack.c.b16 %v211, %v209
    %v268 = vpack.c.b16 %v212, %v210
    %v269 = vpack.c.b16 %v215, %v213
    %v270 = vpack.c.b16 %v216, %v214
    %v271 = vpack.c.b16 %v219, %v217
    %v272 = vpack.c.b16 %v220, %v218
    %v273 = vpack.c.b16 %v223, %v221
    %v274 = vpack.c.b16 %v224, %v222
    %v275 = vpack.c.b16 %v227, %v225
    %v276 = vpack.c.b16 %v228, %v226
    %v277 = vpack.c.b16 %v231, %v229
    %v278 = vpack.c.b16 %v232, %v230
    %v279 = vpack.c.b16 %v235, %v233
    %v280 = vpack.c.b16 %v236, %v234
    %v281 = vpack.c.b16 %v239, %v237
    %v282 = vpack.c.b16 %v240, %v238
    %v283 = vpack.c.b16 %v243, %v241
    %v284 = vpack.c.b16 %v244, %v242
    %v285 = vpack.c.b16 %v247, %v245
    %v286 = vpack.c.b16 %v248, %v246
    %v287 = vpack.c.b16 %v251, %v249
    %v288 = vpack.c.b16 %v252, %v250
    %v289 = vpack.c.b16 %v255, %v253
    %v290 = vpack.c.b16 %v256, %v254
    %v291 = vpack.c.b16 %v259, %v257
    %v292 = vpack.c.b16 %v260, %v258
    %325 = vmatprep.subr.bf16.mxu0 %v262
    %326 = vmatpush1.bf16.msra.mxu0 %v261
    %327 = vmatprep.subr.bf16.mxu0 %v264
    %328 = vmatpush1.bf16.msra.mxu0 %v263
    %329 = vmatprep.subr.bf16.mxu0 %v266
    %330 = vmatpush1.bf16.msra.mxu0 %v265
    %331 = vmatprep.subr.bf16.mxu0 %v268
    %332 = vmatpush1.bf16.msra.mxu0 %v267
    %333 = vmatprep.subr.bf16.mxu0 %v270
    %334 = vmatpush1.bf16.msra.mxu0 %v269
    %335 = vmatprep.subr.bf16.mxu0 %v272
    %336 = vmatpush1.bf16.msra.mxu0 %v271
    %337 = vmatprep.subr.bf16.mxu0 %v274
    %338 = vmatpush1.bf16.msra.mxu0 %v273
    %339 = vmatprep.subr.bf16.mxu0 %v276
    %340 = vmatpush1.bf16.msra.mxu0 %v275
    %341 = vmatprep.subr.bf16.mxu0 %v278
    %342 = vmatpush1.bf16.msra.mxu0 %v277
    %343 = vmatprep.subr.bf16.mxu0 %v280
    %344 = vmatpush1.bf16.msra.mxu0 %v279
    %345 = vmatprep.subr.bf16.mxu0 %v282
    %346 = vmatpush1.bf16.msra.mxu0 %v281
    %347 = vmatprep.subr.bf16.mxu0 %v284
    %348 = vmatpush1.bf16.msra.mxu0 %v283
    %349 = vmatprep.subr.bf16.mxu0 %v286
    %350 = vmatpush1.bf16.msra.mxu0 %v285
    %351 = vmatprep.subr.bf16.mxu0 %v288
    %352 = vmatpush1.bf16.msra.mxu0 %v287
    %353 = vmatprep.subr.bf16.mxu0 %v290
    %354 = vmatpush1.bf16.msra.mxu0 %v289
    %355 = vmatprep.subr.bf16.mxu0 %v292
    %356 = vmatpush1.bf16.msra.mxu0 %v291
    %357 = vmatprep.mubr.bf16.mxu0 %v120
    %358 = vmatmul.mubr.bf16.gmra.mrb[0].mxu0 %v119
    %v359 = vpop.f32.mrb[0].mxu0
    %v360 = vadd.f32 %v158, %v359
    %v361 = vpop.f32.mrb[0].mxu0
    %v362 = vadd.f32 %v162, %v361
    %v363 = vpop.f32.mrb[0].mxu0
    %v364 = vpop.f32.mrb[0].mxu0
    %365 = vdwg.mxu0
    %v366 = vmax.f32 %v360, 0.0
    %v367 = vmax.f32 %v362, 0.0
    %v368 = vpack.c.bf16 %v366, %v366
    %v369 = vpack.c.bf16 %v367, %v367
    %v370 = vld [vmem:[%s6] sm:$0xf]
    %v371 = vld [vmem:[%s6 + $0x4] sm:$0xf]
    %v372 = vld [vmem:[%s6 + $0x8] sm:$0xf]
    %v373 = vld [vmem:[%s6 + $0xc] sm:$0xf]
    %v374 = vld [vmem:[%s6 + $0x10] sm:$0xf]
    %v375 = vld [vmem:[%s6 + $0x14] sm:$0xf]
    %v376 = vld [vmem:[%s6 + $0x18] sm:$0xf]
    %v377 = vld [vmem:[%s6 + $0x1c] sm:$0xf]
    %v378 = vld [vmem:[%s6 + $0x20] sm:$0xf]
    %v379 = vld [vmem:[%s6 + $0x24] sm:$0xf]
    %v380 = vld [vmem:[%s6 + $0x28] sm:$0xf]
    %v381 = vld [vmem:[%s6 + $0x2c] sm:$0xf]
    %v382 = vld [vmem:[%s6 + $0x30] sm:$0xf]
    %v383 = vld [vmem:[%s6 + $0x34] sm:$0xf]
    %v384 = vld [vmem:[%s6 + $0x38] sm:$0xf]
    %v385 = vld [vmem:[%s6 + $0x3c] sm:$0xf]
    %v386 = vld [vmem:[%s6 + $0x40] sm:$0xf]
    %v387 = vld [vmem:[%s6 + $0x44] sm:$0xf]
    %v388 = vld [vmem:[%s6 + $0x48] sm:$0xf]
    %v389 = vld [vmem:[%s6 + $0x4c] sm:$0xf]
    %v390 = vld [vmem:[%s6 + $0x50] sm:$0xf]
    %v391 = vld [vmem:[%s6 + $0x54] sm:$0xf]
    %v392 = vld [vmem:[%s6 + $0x58] sm:$0xf]
    %v393 = vld [vmem:[%s6 + $0x5c] sm:$0xf]
    %v394 = vld [vmem:[%s6 + $0x60] sm:$0xf]
    %v395 = vld [vmem:[%s6 + $0x64] sm:$0xf]
    %v396 = vld [vmem:[%s6 + $0x68] sm:$0xf]
    %v397 = vld [vmem:[%s6 + $0x6c] sm:$0xf]
    %v398 = vld [vmem:[%s6 + $0x70] sm:$0xf]
    %v399 = vld [vmem:[%s6 + $0x74] sm:$0xf]
    %v400 = vld [vmem:[%s6 + $0x78] sm:$0xf]
    %v401 = vld [vmem:[%s6 + $0x7c] sm:$0xf]
    %v402 = vld [vmem:[%s7] sm:$0x1]
    %v404 = vlaneseq
    %v405 = vshrl.u32 %v404, 7
    %v406 = vsub.s32 0, %v405
    %v407 = vrot.slane %v402, %v406
    %v441 = vunpack.c.l.b16 %v370
    %v442 = vunpack.c.l.b16 %v371
    %v443 = vunpack.c.l.b16 %v372
    %v444 = vunpack.c.l.b16 %v373
    %v445 = vunpack.c.l.b16 %v374
    %v446 = vunpack.c.l.b16 %v375
    %v447 = vunpack.c.l.b16 %v376
    %v448 = vunpack.c.l.b16 %v377
    %v449 = vunpack.c.l.b16 %v378
    %v450 = vunpack.c.l.b16 %v379
    %v451 = vunpack.c.l.b16 %v380
    %v452 = vunpack.c.l.b16 %v381
    %v453 = vunpack.c.l.b16 %v382
    %v454 = vunpack.c.l.b16 %v383
    %v455 = vunpack.c.l.b16 %v384
    %v456 = vunpack.c.l.b16 %v385
    %v457 = vunpack.c.l.b16 %v386
    %v458 = vunpack.c.l.b16 %v387
    %v459 = vunpack.c.l.b16 %v388
    %v460 = vunpack.c.l.b16 %v389
    %v461 = vunpack.c.l.b16 %v390
    %v462 = vunpack.c.l.b16 %v391
    %v463 = vunpack.c.l.b16 %v392
    %v464 = vunpack.c.l.b16 %v393
    %v465 = vunpack.c.l.b16 %v394
    %v466 = vunpack.c.l.b16 %v395
    %v467 = vunpack.c.l.b16 %v396
    %v468 = vunpack.c.l.b16 %v397
    %v469 = vunpack.c.l.b16 %v398
    %v470 = vunpack.c.l.b16 %v399
    %v471 = vunpack.c.l.b16 %v400
    %v472 = vunpack.c.l.b16 %v401
    %v473 = vpack.c.b16 %v442, %v441
    %v474 = vpack.c.b16 %v444, %v443
    %v475 = vpack.c.b16 %v446, %v445
    %v476 = vpack.c.b16 %v448, %v447
    %v477 = vpack.c.b16 %v450, %v449
    %v478 = vpack.c.b16 %v452, %v451
    %v479 = vpack.c.b16 %v454, %v453
    %v480 = vpack.c.b16 %v456, %v455
    %v481 = vpack.c.b16 %v458, %v457
    %v482 = vpack.c.b16 %v460, %v459
    %v483 = vpack.c.b16 %v462, %v461
    %v484 = vpack.c.b16 %v464, %v463
    %v485 = vpack.c.b16 %v466, %v465
    %v486 = vpack.c.b16 %v468, %v467
    %v487 = vpack.c.b16 %v470, %v469
    %v488 = vpack.c.b16 %v472, %v471
    %505 = vmatprep.subr.bf16.mxu0 0
    %506 = vmatpush1.bf16.msra.mxu0 %v473
    %507 = vmatprep.subr.bf16.mxu0 0
    %508 = vmatpush1.bf16.msra.mxu0 %v474
    %509 = vmatprep.subr.bf16.mxu0 0
    %510 = vmatpush1.bf16.msra.mxu0 %v475
    %511 = vmatprep.subr.bf16.mxu0 0
    %512 = vmatpush1.bf16.msra.mxu0 %v476
    %513 = vmatprep.subr.bf16.mxu0 0
    %514 = vmatpush1.bf16.msra.mxu0 %v477
    %515 = vmatprep.subr.bf16.mxu0 0
    %516 = vmatpush1.bf16.msra.mxu0 %v478
    %517 = vmatprep.subr.bf16.mxu0 0
    %518 = vmatpush1.bf16.msra.mxu0 %v479
    %519 = vmatprep.subr.bf16.mxu0 0
    %520 = vmatpush1.bf16.msra.mxu0 %v480
    %521 = vmatprep.subr.bf16.mxu0 0
    %522 = vmatpush1.bf16.msra.mxu0 %v481
    %523 = vmatprep.subr.bf16.mxu0 0
    %524 = vmatpush1.bf16.msra.mxu0 %v482
    %525 = vmatprep.subr.bf16.mxu0 0
    %526 = vmatpush1.bf16.msra.mxu0 %v483
    %527 = vmatprep.subr.bf16.mxu0 0
    %528 = vmatpush1.bf16.msra.mxu0 %v484
    %529 = vmatprep.subr.bf16.mxu0 0
    %530 = vmatpush1.bf16.msra.mxu0 %v485
    %531 = vmatprep.subr.bf16.mxu0 0
    %532 = vmatpush1.bf16.msra.mxu0 %v486
    %533 = vmatprep.subr.bf16.mxu0 0
    %534 = vmatpush1.bf16.msra.mxu0 %v487
    %535 = vmatprep.subr.bf16.mxu0 0
    %536 = vmatpush1.bf16.msra.mxu0 %v488
    %537 = vmatprep.mubr.bf16.mxu0 %v369
    %538 = vmatmul.mubr.bf16.gmra.mrb[0].mxu0 %v368
    %v539 = vpop.f32.mrb[0].mxu0
    %v540 = vadd.f32 %v407, %v539
    %v541 = vpop.f32.mrb[0].mxu0
    %v542 = vpop.f32.mrb[0].mxu0
    %v543 = vpop.f32.mrb[0].mxu0
    %544 = vdwg.mxu0
    %v545 = vtanh.pop %v540
    %s546 = sld [smem:[#allocation2]]
    %v547 = vstv %s546
    %v548 = vmul.f32 %v547, %v545
    %vm549 = vcmask 58368
    %550 = vst.msk [vmem:[#allocation6] sm:$0x3] %vm549, %v548
    // Predicated region
    $region38: #{tpu_custom_call.1} parent=1 // pred_check
      _
    $region39: #{tpu_custom_call.1} parent=1 // pred_check_branch
      %552 = sbr.rel (0) target = $region41
    $region40: #{tpu_custom_call.1} parent=1 // pred_region
      %s554 = ssub.s32 32, 32
      %555 = vsyncadd [#allocation5], %s554
      %s557 = sshll.u32 [#allocation6], 4
      %s558 = int_to_ptr.vmem [resolvable:$true] %s557
      %560 = dma.vmem_to_hbm [thread:$0]  %s558, 32, %s8, [#allocation5]
    $region41: #{tpu_custom_call.1} parent=1 // pred_fallthru
      _
    // Predicated region
    $region42: #{tpu_custom_call.1} parent=1 // pred_check
      _
    $region43: #{tpu_custom_call.1} parent=1 // pred_check_branch
      %562 = sbr.rel (0) target = $region45
    $region44: #{tpu_custom_call.1} parent=1 // pred_region
      %563 = dma.done [#allocation5], 32
    $region45: #{tpu_custom_call.1} parent=1 // pred_fallthru
      _
    %564 = vsyncpa [#allocation4], 1
    %565 = vsyncpa [#allocation5], 1

</llo_original>
